<compile_context>
chip_gen: v7x
topology: tpu7x:2x2x1
jax: 0.10.0
libtpu: 0.0.40
codegen_flags: <defaults>
</compile_context>

<pallas_src>
import functools

import numpy as np
import jax
import jax.numpy as jnp
from jax.experimental import pallas as pl
from jax.experimental.pallas import tpu as pltpu

_LOG2 = float(np.log(2.0))


def mvmf_loss_kernel(y_pred_ref, feat_ref, cfeat_scaled_ref, bias_ref, out_ref,
                     *, valid_rows, block_rows):
    # fused, shift-only log-softmax over clusters (dim=1 in the torch module)
    logits = y_pred_ref[...].astype(jnp.float32)                     # (TB, C)
    lmax = jnp.max(logits, axis=-1, keepdims=True)
    shifted = logits - lmax                                          # (TB, C)
    logz = jnp.log(jnp.sum(jnp.exp(shifted), axis=-1, keepdims=True))  # (TB, 1)

    # exp(dens)-scaled cosine distances on the MXU: (TB,3) @ (3,C)
    dist_scaled = jnp.dot(feat_ref[...], cfeat_scaled_ref[...],
                          preferred_element_type=jnp.float32)        # (TB, C)

    # gamma = log(2*softmax(logits)) + dens + exp(dens)*(dist-1)
    #       = (shifted - logz) + bias + dist_scaled
    # with bias = dens + log(2) - exp(dens).  Keep logz per-row only.
    gamma_p = shifted + bias_ref[...] + dist_scaled                  # (TB, C)

    gmax = jnp.max(gamma_p, axis=-1, keepdims=True)                  # (TB, 1)
    lse_p = gmax + jnp.log(jnp.sum(jnp.exp(gamma_p - gmax), axis=-1,
                                   keepdims=True))                   # (TB, 1)

    # per-row loss = -logsumexp(gamma) = logz - logsumexp(gamma')
    row_loss = logz - lse_p                                          # (TB, 1)

    # in-kernel valid-row mask (no HBM mask stream)
    row_ids = (jax.lax.broadcasted_iota(jnp.int32, row_loss.shape, 0)
               + pl.program_id(0) * block_rows)
    partial = jnp.sum(jnp.where(row_ids < valid_rows, row_loss, 0.0))

    out_ref[...] = jnp.full(out_ref.shape, partial, dtype=jnp.float32)


def _encode_coordinates(coords):
    """lat-long (N, 2) -> encoded (N, 3), mirroring encode_coordinates_torch."""
    lat = coords[:, 0]
    lon = coords[:, 1]
    e0 = (-lat + 90.0) / 180.0
    e1 = (jnp.sin(lon * 2.0 * jnp.pi / 360.0) + 1.0) / 2.0
    e2 = (jnp.cos(lon * 2.0 * jnp.pi / 360.0) + 1.0) / 2.0
    return jnp.stack([e0, e1, e2], axis=-1)


def _sphere_features(encoded):
    """encoded (N, 3) -> 3-D unit-sphere feature vectors (N, 3)."""
    lat_r = encoded[:, 0] * jnp.pi
    lon_sin = 2.0 * encoded[:, 1] - 1.0
    lon_cos = 2.0 * encoded[:, 2] - 1.0
    return jnp.stack(
        [jnp.sin(lat_r) * lon_cos, jnp.sin(lat_r) * lon_sin, jnp.cos(lat_r)],
        axis=-1,
    )


def _round_up(x, m):
    return ((x + m - 1) // m) * m


def _cdiv(a, b):
    return -(-a // b)


def mvmf_loss(y_pred, y_true_encoded, centers_latlon, densities, *,
              block_b=None, vmem_limit_bytes=48 * 1024 * 1024):
    """
    y_pred:          (B, C) raw logits in native dtype (softmax_input=True path)
    y_true_encoded:  (B, 3) encoded coordinates
    centers_latlon:  (C, 2) lat-long of cluster centers
    densities:       (1, C) density exponents
    returns scalar mean MvMF negative log-likelihood.
    """
    B, C = y_pred.shape

    # parameter-side glue (tiny, (C,)-sized): fold exp(dens) into the cluster
    # matrix and precompute the per-cluster bias row.
    centers_encoded = _encode_coordinates(centers_latlon)                 # (C, 3)
    feat = _sphere_features(y_true_encoded).astype(jnp.float32)           # (B, 3)
    cfeat = _sphere_features(centers_encoded).T.astype(jnp.float32)       # (3, C)
    dens = densities.reshape(1, C).astype(jnp.float32)                    # (1, C)
    edens = jnp.exp(dens)                                                 # (1, C)
    cfeat_scaled = cfeat * edens                                          # (3, C)
    bias = dens + _LOG2 - edens                                           # (1, C)

    # batch tiling: size TB from C so the double-buffered y_pred tile stays
    # near half the VMEM budget, prefer 512-1024 rows; keep GB >= 2 when the
    # batch allows so the "parallel" axis can span both v7x TensorCores.
    if block_b is None:
        budget = vmem_limit_bytes // 2
        block_b = max(8, min(1024, budget // (2 * C * 4)))
    TB = _round_up(min(block_b, B), 8)
    if B > 8:
        TB = min(TB, _round_up(_cdiv(B, 2), 8))
    TB = max(TB, 8)
    B_pad = _round_up(B, TB)
    GB = B_pad // TB

    if B_pad != B:
        y_pred = jnp.pad(y_pred, ((0, B_pad - B), (0, 0)))
        feat = jnp.pad(feat, ((0, B_pad - B), (0, 0)))

    kernel = functools.partial(mvmf_loss_kernel, valid_rows=B, block_rows=TB)

    out = pl.pallas_call(
        kernel,
        out_shape=jax.ShapeDtypeStruct((GB, 1, 128), jnp.float32),
        grid=(GB,),
        in_specs=[
            pl.BlockSpec((TB, C), lambda b: (b, 0)),   # y_pred (native dtype)
            pl.BlockSpec((TB, 3), lambda b: (b, 0)),   # sample sphere features
            pl.BlockSpec((3, C), lambda b: (0, 0)),    # exp(dens)-scaled centers
            pl.BlockSpec((1, C), lambda b: (0, 0)),    # bias row
        ],
        out_specs=pl.BlockSpec((1, 1, 128), lambda b: (b, 0, 0)),
        compiler_params=pltpu.CompilerParams(
            dimension_semantics=("parallel",),
            vmem_limit_bytes=vmem_limit_bytes,
        ),
    )(y_pred, feat, cfeat_scaled, bias)

    # TODO(synk): for very large C, add an inner "arbitrary" cluster grid axis
    # with an online logsumexp (carry m/l and logZ accumulators in VMEM scratch)
    # instead of a single lane-tile per block.
    return jnp.sum(out[:, 0, 0]) / B


def mvmf_loss_reference(y_pred, y_true_encoded, centers_latlon, densities):
    """Pure-JAX reference mirroring the torch forward pass."""
    weights = jax.nn.softmax(y_pred.astype(jnp.float32), axis=1)
    feat = _sphere_features(y_true_encoded)
    cfeat = _sphere_features(_encode_coordinates(centers_latlon))
    dist = feat @ cfeat.T
    gamma = jnp.log(2.0 * weights) + densities + jnp.exp(densities) * (dist - 1.0)
    gmax = jnp.max(gamma, axis=-1, keepdims=True)
    loss = -(gmax[:, 0] + jnp.log(jnp.sum(jnp.exp(gamma - gmax), axis=-1)))
    return jnp.mean(loss)


if __name__ == "__main__":
    B = 16         # batch size
    C = 256        # n_clusters

    key = jax.random.PRNGKey(0)
    k1, k2, k3, k4, k5 = jax.random.split(key, 5)

    # Deterministic "parameters" (module __init__): centers (C, 2) in lat-long,
    # density exponents (1, C).  Synthetic init, no checkpoint loading.
    centers_lat = jax.random.uniform(k1, (C,), minval=-90.0, maxval=90.0)
    centers_lon = jax.random.uniform(k2, (C,), minval=-180.0, maxval=180.0)
    centers_latlon = jnp.stack([centers_lat, centers_lon], axis=-1)       # (C, 2)
    density_inits = jnp.linspace(4.0, 6.0, C, dtype=jnp.float32)
    densities = density_inits[None, :]                                    # (1, C)

    # Inputs to forward(): y_pred raw logits, y_true encoded coordinates.
    y_pred = jax.random.normal(k3, (B, C), dtype=jnp.float32)
    true_lat = jax.random.uniform(k4, (B,), minval=-90.0, maxval=90.0)
    true_lon = jax.random.uniform(k5, (B,), minval=-180.0, maxval=180.0)
    y_true = _encode_coordinates(jnp.stack([true_lat, true_lon], axis=-1))  # (B, 3)

    # block_b=8 exercises the batch grid (GB=2) even at this small size.
    loss = mvmf_loss(y_pred, y_true, centers_latlon, densities, block_b=8)
    loss = jax.block_until_ready(loss)

    ref = mvmf_loss_reference(y_pred, y_true, centers_latlon, densities)
    # Folding exp(densities) into the cluster matrix reorders rounding at
    # edens*2^-24 scale, so the tolerance is slightly looser than 1e-5.
    np.testing.assert_allclose(np.asarray(loss), np.asarray(ref), rtol=1e-4, atol=1e-4)

    print("KERNEL_OK")
</pallas_src>

<mosaic_0001>
module attributes {stable_mosaic.version = 11 : i64} {
  func.func @mvmf_loss_kernel(%arg0: i32, %arg1: memref<8x256xf32, #tpu.memory_space<vmem>>, %arg2: memref<8x3xf32, #tpu.memory_space<vmem>>, %arg3: memref<3x256xf32, #tpu.memory_space<vmem>>, %arg4: memref<1x256xf32, #tpu.memory_space<vmem>>, %arg5: memref<1x1x128xf32, #tpu.memory_space<vmem>>) attributes {dimension_semantics = [#tpu.dimension_semantics<parallel>], iteration_bounds = array<i64: 2>, scalar_prefetch = 0 : i64, scratch_operands = 0 : i64, tpu.core_type = #tpu.core_type<tc>, window_params = [{transform_indices = @transform_0, window_bounds = array<i64: 8, 256>}, {transform_indices = @transform_1, window_bounds = array<i64: 8, 3>}, {pipeline_mode = #tpu.pipeline_mode<synchronous>, transform_indices = @transform_2, window_bounds = array<i64: 3, 256>}, {pipeline_mode = #tpu.pipeline_mode<synchronous>, transform_indices = @transform_3, window_bounds = array<i64: 1, 256>}, {transform_indices = @transform_4, window_bounds = array<i64: 1, 1, 128>}]} {
    %c0 = arith.constant 0 : index
    %c0_0 = arith.constant 0 : index
    %0 = vector.load %arg1[%c0, %c0_0] : memref<8x256xf32, #tpu.memory_space<vmem>>, vector<8x256xf32>
    %cst = arith.constant dense<0xFF800000> : vector<8xf32>
    %1 = vector.multi_reduction <maximumf>, %0, %cst [1] : vector<8x256xf32> to vector<8xf32>
    %2 = vector.shape_cast %1 : vector<8xf32> to vector<8x1xf32>
    %3 = vector.broadcast %2 : vector<8x1xf32> to vector<8x256xf32>
    %4 = arith.subf %0, %3 : vector<8x256xf32>
    %5 = math.exp %4 : vector<8x256xf32>
    %cst_1 = arith.constant dense<0.000000e+00> : vector<8xf32>
    %6 = vector.multi_reduction <add>, %5, %cst_1 [1] : vector<8x256xf32> to vector<8xf32>
    %7 = vector.shape_cast %6 : vector<8xf32> to vector<8x1xf32>
    %8 = math.log %7 : vector<8x1xf32>
    %c0_2 = arith.constant 0 : index
    %c0_3 = arith.constant 0 : index
    %9 = vector.load %arg2[%c0_2, %c0_3] : memref<8x3xf32, #tpu.memory_space<vmem>>, vector<8x3xf32>
    %c0_4 = arith.constant 0 : index
    %c0_5 = arith.constant 0 : index
    %10 = vector.load %arg3[%c0_4, %c0_5] : memref<3x256xf32, #tpu.memory_space<vmem>>, vector<3x256xf32>
    %cst_6 = arith.constant dense<0.000000e+00> : vector<8x256xf32>
    %11 = tpu.matmul %9, %10, %cst_6 {dimension_numbers = #tpu.dot_dimension_numbers<[1], [0], [0], [1], [0, 0, 1, 1], [], []>} : vector<8x3xf32>, vector<3x256xf32>, vector<8x256xf32> -> vector<8x256xf32>
    %c0_7 = arith.constant 0 : index
    %c0_8 = arith.constant 0 : index
    %12 = vector.load %arg4[%c0_7, %c0_8] : memref<1x256xf32, #tpu.memory_space<vmem>>, vector<1x256xf32>
    %13 = vector.broadcast %12 : vector<1x256xf32> to vector<8x256xf32>
    %14 = arith.addf %4, %13 : vector<8x256xf32>
    %15 = arith.addf %14, %11 : vector<8x256xf32>
    %cst_9 = arith.constant dense<0xFF800000> : vector<8xf32>
    %16 = vector.multi_reduction <maximumf>, %15, %cst_9 [1] : vector<8x256xf32> to vector<8xf32>
    %17 = vector.shape_cast %16 : vector<8xf32> to vector<8x1xf32>
    %18 = vector.broadcast %17 : vector<8x1xf32> to vector<8x256xf32>
    %19 = arith.subf %15, %18 : vector<8x256xf32>
    %20 = math.exp %19 : vector<8x256xf32>
    %cst_10 = arith.constant dense<0.000000e+00> : vector<8xf32>
    %21 = vector.multi_reduction <add>, %20, %cst_10 [1] : vector<8x256xf32> to vector<8xf32>
    %22 = vector.shape_cast %21 : vector<8xf32> to vector<8x1xf32>
    %23 = math.log %22 : vector<8x1xf32>
    %24 = arith.addf %17, %23 : vector<8x1xf32>
    %25 = arith.subf %8, %24 : vector<8x1xf32>
    %26 = tpu.iota {dimensions = array<i32: 0>} : vector<8x1xi32>
    %c8_i32 = arith.constant 8 : i32
    %27 = arith.muli %arg0, %c8_i32 : i32
    %28 = vector.broadcast %27 : i32 to vector<8x1xi32>
    %29 = arith.addi %26, %28 : vector<8x1xi32>
    %c16_i32 = arith.constant 16 : i32
    %30 = vector.broadcast %c16_i32 : i32 to vector<8x1xi32>
    %31 = arith.cmpi slt, %29, %30 : vector<8x1xi32>
    %cst_11 = arith.constant 0.000000e+00 : f32
    %32 = vector.broadcast %cst_11 : f32 to vector<8x1xf32>
    %33 = arith.select %31, %25, %32 : vector<8x1xi1>, vector<8x1xf32>
    %34 = vector.shape_cast %33 : vector<8x1xf32> to vector<1x8x1xf32>
    %cst_12 = arith.constant dense<0.000000e+00> : vector<1xf32>
    %35 = vector.multi_reduction <add>, %34, %cst_12 [1, 2] : vector<1x8x1xf32> to vector<1xf32>
    %36 = vector.shape_cast %35 : vector<1xf32> to vector<1x1x1xf32>
    %37 = vector.extract %36[0, 0, 0] : f32 from vector<1x1x1xf32>
    %38 = vector.broadcast %37 : f32 to vector<1x1x128xf32>
    %c0_13 = arith.constant 0 : index
    %c0_14 = arith.constant 0 : index
    %c0_15 = arith.constant 0 : index
    %39 = vector.load %arg5[%c0_13, %c0_14, %c0_15] : memref<1x1x128xf32, #tpu.memory_space<vmem>>, vector<1x1x128xf32>
    tpu.vector_store %arg5[%c0_13, %c0_14, %c0_15], %38 {strides = array<i32>} : memref<1x1x128xf32, #tpu.memory_space<vmem>>, vector<1x1x128xf32>,
    return
  }
  func.func @transform_0(%arg0: i32) -> (i32, i32) {
    %c0_i32 = arith.constant 0 : i32
    %c0_i32_0 = arith.constant 0 : i32
    return %arg0, %c0_i32 : i32, i32
  }
  func.func @transform_1(%arg0: i32) -> (i32, i32) {
    %c0_i32 = arith.constant 0 : i32
    %c0_i32_0 = arith.constant 0 : i32
    return %arg0, %c0_i32 : i32, i32
  }
  func.func @transform_2(%arg0: i32) -> (i32, i32) {
    %c0_i32 = arith.constant 0 : i32
    %c0_i32_0 = arith.constant 0 : i32
    %c0_i32_1 = arith.constant 0 : i32
    return %c0_i32, %c0_i32_0 : i32, i32
  }
  func.func @transform_3(%arg0: i32) -> (i32, i32) {
    %c0_i32 = arith.constant 0 : i32
    %c0_i32_0 = arith.constant 0 : i32
    %c0_i32_1 = arith.constant 0 : i32
    return %c0_i32, %c0_i32_0 : i32, i32
  }
  func.func @transform_4(%arg0: i32) -> (i32, i32, i32) {
    %c0_i32 = arith.constant 0 : i32
    %c0_i32_0 = arith.constant 0 : i32
    %c0_i32_1 = arith.constant 0 : i32
    return %arg0, %c0_i32, %c0_i32_0 : i32, i32, i32
  }
}

</mosaic_0001>

<llo_original>
// kernel: tpu_custom_call.1
$region0: #{tpu_custom_call.1}
  #allocation0 [shape = 'u32[]', space=smem, size = 0x4, offset = 0x4, fixed_abs, tag = 'smem constant byte address 0x4 - core index']
  #allocation1 [shape = 'u32[144,128]{1,0:T(1,128)}', space=vmem, size = 0x12000, scoped, tag = 'internal scratch']
  %s0 = inlined_call_operand.hbm [shape: f32[16,256], index: 0, kind: input, shape index: {}]
  %s1 = inlined_call_operand.vmem [shape: f32[16,3], index: 1, kind: input, shape index: {}]
  %s2 = inlined_call_operand.vmem [shape: f32[3,256], index: 2, kind: input, shape index: {}]
  %s3 = inlined_call_operand.vmem [shape: f32[1,256], index: 3, kind: input, shape index: {}]
  %s4 = inlined_call_operand.hbm [shape: f32[2,1,128], index: 4, kind: output, shape index: {}]
  %s5 = sld [smem:[#allocation0]]
  $region53: #{tpu_custom_call.1} parent=0
    _
  %s7 = ssub.s32 1, %s5
  %s8 = scalar_select 0, %s7, %s5
  $region1: #{tpu_custom_call.1} parent=0
    #allocation2 [shape = 'u8[16384]{0}', space=vmem, size = 0x4000, scoped, tag = 'input window, operand 0']
    #allocation3 [shape = 's32[2]{0}', space=sflag, size = 0x8, scoped, tag = 'scoped memory for tpu_custom_call.1']
    #allocation4 [shape = 's32[2]{0}', space=sflag, size = 0x8, scoped, tag = 'scoped memory for tpu_custom_call.1']
    #allocation5 [shape = 'u8[1024]{0}', space=vmem, size = 0x400, scoped, tag = 'output window, operand 0']
    %9 = vsyncpa [#allocation3], 0
    %s10 = scalar_lea.sflag [#allocation3], 1
    %11 = vsyncpa %s10, 0
    %12 = vsyncpa [#allocation4], 0
    %s13 = scalar_lea.sflag [#allocation4], 1
    %14 = vsyncpa %s13, 0
    loop: start=0, step=1, limit=4
    $region2: #{tpu_custom_call.1} parent=1 // loop_pre_header
      _
    $region3: #{tpu_custom_call.1} parent=1 // loop_header
      %s16 = sphi 0, %s20
      %p17 = scmp.ge.s32.totalorder %s16, 4
      %s26 = sphi 0, %s28
      %s29 = sphi 0, %s26
      %s30 = sphi 0, %s29
      %s46 = sphi 0, %s30
      %s52 = sphi 0, %s54
      %s55 = sphi 0, %s52
      %s56 = sphi 0, %s55
      %s72 = sphi 0, %s56
      %s76 = sphi 0, %s76
      %s78 = sphi 0, %s76
      %s79 = sphi 0, %s78
      %s93 = sphi 0, %s79
      %s97 = sphi 0, %s97
      %s99 = sphi 0, %s97
      %s100 = sphi 0, %s99
      %s114 = sphi 0, %s100
      %s120 = sphi 0, %s122
      %s123 = sphi 0, %s120
      %s124 = sphi 0, %s123
      %s140 = sphi 0, %s124
    $region4: #{tpu_custom_call.1} parent=1 // loop_header_branch
      %19 = sbr.rel (%p17) target = $region8
    $region5: #{tpu_custom_call.1} parent=1 // loop_body
      %s21 = ssub.s32 %s16, 1
      %s22 = ssub.s32 %s16, 2
      %s23 = sadd.s32 %s16, 1
      %s24 = ssub.s32 %s16, %s23
      %p25 = scmp.eq.s32.totalorder %s24, 0
      %s27 = sadd.s32 %s26, 1
      %s28 = scalar_select %p25, %s26, %s27
      %p31 = pneg %p25
      %p32 = scmp.eq.s32.totalorder %s16, 1
      %p33 = por %p31, %p32
      %p34 = scmp.ne.s32.totalorder %s26, %s29
      %p35 = scmp.eq.s32.totalorder %s16, 0
      %p36 = por %p34, %p35
      %p37 = scmp.ne.s32.totalorder %s26, %s29
      %p38 = scmp.eq.s32.totalorder %s21, 1
      %p39 = por %p37, %p38
      %p40 = scmp.ne.s32.totalorder %s29, %s30
      %p41 = scmp.eq.s32.totalorder %s21, 0
      %p42 = por %p40, %p41
      %p43 = scmp.ne.s32.totalorder %s29, %s30
      %p44 = scmp.eq.s32.totalorder %s22, 1
      %p45 = por %p43, %p44
      %p47 = scmp.ne.s32.totalorder %s30, %s46
      %p48 = scmp.eq.s32.totalorder %s22, 0
      %p49 = por %p47, %p48
      %s50 = ssub.s32 %s16, %s23
      %p51 = scmp.eq.s32.totalorder %s50, 0
      %s53 = sadd.s32 %s52, 1
      %s54 = scalar_select %p51, %s52, %s53
      %p57 = pneg %p51
      %p58 = scmp.eq.s32.totalorder %s16, 1
      %p59 = por %p57, %p58
      %p60 = scmp.ne.s32.totalorder %s52, %s55
      %p61 = scmp.eq.s32.totalorder %s16, 0
      %p62 = por %p60, %p61
      %p63 = scmp.ne.s32.totalorder %s52, %s55
      %p64 = scmp.eq.s32.totalorder %s21, 1
      %p65 = por %p63, %p64
      %p66 = scmp.ne.s32.totalorder %s55, %s56
      %p67 = scmp.eq.s32.totalorder %s21, 0
      %p68 = por %p66, %p67
      %p69 = scmp.ne.s32.totalorder %s55, %s56
      %p70 = scmp.eq.s32.totalorder %s22, 1
      %p71 = por %p69, %p70
      %p73 = scmp.ne.s32.totalorder %s56, %s72
      %p74 = scmp.eq.s32.totalorder %s22, 0
      %p75 = por %p73, %p74
      %s77 = sadd.s32 %s76, 1
      %p80 = scmp.eq.s32.totalorder %s16, 1
      %p81 = scmp.ne.s32.totalorder %s76, %s78
      %p82 = scmp.eq.s32.totalorder %s16, 0
      %p83 = por %p81, %p82
      %p84 = scmp.ne.s32.totalorder %s76, %s78
      %p85 = scmp.eq.s32.totalorder %s21, 1
      %p86 = por %p84, %p85
      %p87 = scmp.ne.s32.totalorder %s78, %s79
      %p88 = scmp.eq.s32.totalorder %s21, 0
      %p89 = por %p87, %p88
      %p90 = scmp.ne.s32.totalorder %s78, %s79
      %p91 = scmp.eq.s32.totalorder %s22, 1
      %p92 = por %p90, %p91
      %p94 = scmp.ne.s32.totalorder %s79, %s93
      %p95 = scmp.eq.s32.totalorder %s22, 0
      %p96 = por %p94, %p95
      %s98 = sadd.s32 %s97, 1
      %p101 = scmp.eq.s32.totalorder %s16, 1
      %p102 = scmp.ne.s32.totalorder %s97, %s99
      %p103 = scmp.eq.s32.totalorder %s16, 0
      %p104 = por %p102, %p103
      %p105 = scmp.ne.s32.totalorder %s97, %s99
      %p106 = scmp.eq.s32.totalorder %s21, 1
      %p107 = por %p105, %p106
      %p108 = scmp.ne.s32.totalorder %s99, %s100
      %p109 = scmp.eq.s32.totalorder %s21, 0
      %p110 = por %p108, %p109
      %p111 = scmp.ne.s32.totalorder %s99, %s100
      %p112 = scmp.eq.s32.totalorder %s22, 1
      %p113 = por %p111, %p112
      %p115 = scmp.ne.s32.totalorder %s100, %s114
      %p116 = scmp.eq.s32.totalorder %s22, 0
      %p117 = por %p115, %p116
      %s118 = ssub.s32 %s16, %s23
      %p119 = scmp.eq.s32.totalorder %s118, 0
      %s121 = sadd.s32 %s120, 1
      %s122 = scalar_select %p119, %s120, %s121
      %p125 = pneg %p119
      %p126 = scmp.eq.s32.totalorder %s16, 1
      %p127 = por %p125, %p126
      %p128 = scmp.ne.s32.totalorder %s120, %s123
      %p129 = scmp.eq.s32.totalorder %s16, 0
      %p130 = por %p128, %p129
      %p131 = scmp.ne.s32.totalorder %s120, %s123
      %p132 = scmp.eq.s32.totalorder %s21, 1
      %p133 = por %p131, %p132
      %p134 = scmp.ne.s32.totalorder %s123, %s124
      %p135 = scmp.eq.s32.totalorder %s21, 0
      %p136 = por %p134, %p135
      %p137 = scmp.ne.s32.totalorder %s123, %s124
      %p138 = scmp.eq.s32.totalorder %s22, 1
      %p139 = por %p137, %p138
      %p141 = scmp.ne.s32.totalorder %s124, %s140
      %p142 = scmp.eq.s32.totalorder %s22, 0
      %p143 = por %p141, %p142
      %p144 = scmp.le.s32.totalorder 1, %s16
      %p145 = scmp.lt.s32.totalorder %s16, 3
      %p146 = pnand %p144, %p145
      %p147 = pneg %p146
      // Predicated region
      $region9: #{tpu_custom_call.1} parent=5 // pred_check
        _
      $region10: #{tpu_custom_call.1} parent=5 // pred_check_branch
        %149 = sbr.rel (%p146) target = $region12
      $region11: #{tpu_custom_call.1} parent=5 // pred_region
        %s150 = ssub.s32 %s16, 1
        // Predicated region
        $region13: #{tpu_custom_call.1} parent=11 // pred_check
          %p151 = pneg %p89
        $region14: #{tpu_custom_call.1} parent=11 // pred_check_branch
          %153 = sbr.rel (%p151) target = $region16
        $region15: #{tpu_custom_call.1} parent=11 // pred_region
          _
        $region16: #{tpu_custom_call.1} parent=11 // pred_fallthru
          _
        // Predicated region
        $region17: #{tpu_custom_call.1} parent=11 // pred_check
          %p154 = pneg %p110
        $region18: #{tpu_custom_call.1} parent=11 // pred_check_branch
          %156 = sbr.rel (%p154) target = $region20
        $region19: #{tpu_custom_call.1} parent=11 // pred_region
          _
        $region20: #{tpu_custom_call.1} parent=11 // pred_fallthru
          _
      $region12: #{tpu_custom_call.1} parent=5 // pred_fallthru
        _
      %p157 = scmp.lt.s32.totalorder %s16, 2
      // Predicated region
      $region21: #{tpu_custom_call.1} parent=5 // pred_check
        %p158 = pneg %p157
      $region22: #{tpu_custom_call.1} parent=5 // pred_check_branch
        %160 = sbr.rel (%p158) target = $region24
      $region23: #{tpu_custom_call.1} parent=5 // pred_region
        // Predicated region
        $region25: #{tpu_custom_call.1} parent=23 // pred_check
          %p161 = pneg %p36
        $region26: #{tpu_custom_call.1} parent=23 // pred_check_branch
          %163 = sbr.rel (%p161) target = $region28
        $region27: #{tpu_custom_call.1} parent=23 // pred_region
          %s164 = sand.u32 %s26, 1
          %s165 = scalar_lea.sflag [#allocation3], %s164
          %s166 = sand.u32 %s26, 1
          %s167 = smul.addr %s166, 16
          %s168 = scalar_lea.vmem [#allocation2], %s167
          %s170 = ssub.s32 256, 256
          %171 = vsyncadd %s165, %s170
          %s172 = smul.addr %s16, 2
          %s173 = smul.addr %s172, 128
          %s174 = scalar_lea.hbm %s0, %s173
          %s176 = sshll.u32 %s168, 4
          %s177 = int_to_ptr.vmem [resolvable:$true] %s176
          %179 = dma.hbm_to_vmem [thread:$0]  %s174, 256, %s177, %s165
        $region28: #{tpu_custom_call.1} parent=23 // pred_fallthru
          _
        // Predicated region
        $region29: #{tpu_custom_call.1} parent=23 // pred_check
          %p180 = pneg %p62
        $region30: #{tpu_custom_call.1} parent=23 // pred_check_branch
          %182 = sbr.rel (%p180) target = $region32
        $region31: #{tpu_custom_call.1} parent=23 // pred_region
          %p183 = scmp.lt.s32.totalorder %s16, 1
          %s184 = scalar_select %p183, %s16, 1
          %s185 = smul.addr %s184, 8
          %s186 = scalar_lea.vmem %s1, %s185
        $region32: #{tpu_custom_call.1} parent=23 // pred_fallthru
          _
      $region24: #{tpu_custom_call.1} parent=5 // pred_fallthru
        _
      %p187 = scmp.le.s32.totalorder 1, %s16
      %p188 = scmp.lt.s32.totalorder %s16, 3
      %p189 = pnand %p187, %p188
      %p190 = pneg %p189
      // Predicated region
      $region33: #{tpu_custom_call.1} parent=5 // pred_check
        _
      $region34: #{tpu_custom_call.1} parent=5 // pred_check_branch
        %192 = sbr.rel (%p189) target = $region36
      $region35: #{tpu_custom_call.1} parent=5 // pred_region
        %s193 = ssub.s32 %s16, 1
        %s194 = sand.u32 %s29, 1
        %s195 = scalar_lea.sflag [#allocation3], %s194
        %s196 = sand.u32 %s29, 1
        %s197 = smul.addr %s196, 16
        %s198 = scalar_lea.vmem [#allocation2], %s197
        // Predicated region
        $region37: #{tpu_custom_call.1} parent=35 // pred_check
          %p199 = pneg %p42
        $region38: #{tpu_custom_call.1} parent=35 // pred_check_branch
          %201 = sbr.rel (%p199) target = $region40
        $region39: #{tpu_custom_call.1} parent=35 // pred_region
          %202 = dma.done %s195, 256
        $region40: #{tpu_custom_call.1} parent=35 // pred_fallthru
          _
        %s203 = sand.u32 %s29, 1
        %s204 = scalar_lea.sflag [#allocation3], %s203
        %s205 = sand.u32 %s29, 1
        %s206 = smul.addr %s205, 16
        %s207 = scalar_lea.vmem [#allocation2], %s206
        %p208 = pneg %p42
        %p209 = pneg %p39
        %p210 = scmp.lt.s32.totalorder %s21, 1
        %s211 = scalar_select %p210, %s21, 1
        %s212 = smul.addr %s211, 8
        %s213 = scalar_lea.vmem %s1, %s212
        %p214 = pneg %p68
        %p215 = pneg %p65
        %p216 = pneg %p89
        %p217 = pneg %p86
        %p218 = pneg %p110
        %p219 = pneg %p107
        %p220 = pneg %p136
        %p221 = pneg %p133
        %s222 = sand.u32 %s123, 1
        %s223 = scalar_lea.sflag [#allocation4], %s222
        %s224 = sand.u32 %s123, 1
        %s225 = scalar_lea.vmem [#allocation5], %s224
        %p226 = scmp.lt.s32.totalorder %s21, 1
        %s227 = scalar_select %p226, %s21, 1
        %s228 = smul.addr %s227, 8
        %s229 = scalar_lea.vmem %s1, %s228
        %v230 = vld [vmem:[%s198] sm:$0xff]
        %v231 = vld [vmem:[%s198 + $0x8] sm:$0xff]
        %v232 = vmax.f32 %v230, %v231
        %233 = vmax.xlane.f32.xlu0 %v232
        %v234 = vpop.xlane.xlu0 %233
        %v235 = vsub.f32 %v230, %v234
        %v236 = vsub.f32 %v231, %v234
        %v237 = vmul.f32 %v235, 1.442695
        %v238 = vpow.pop %v237
        %v239 = vmul.f32 %v236, 1.442695
        %v240 = vpow.pop %v239
        %v241 = vadd.f32 %v238, %v240
        %242 = vadd.xlane.f32.xlu0 %v241
        %v243 = vpop.xlane.xlu0 %242
        %v244 = vlog2.pop %v243
        %v245 = vmul.f32 %v244, 0.6931472
        %v246 = vld [vmem:[%s229] sm:$0xff]
        %v247 = vld [vmem:[%s2] sm:$0x77]
        %v249 = vcombine.high %v247, %v247
        %vm250 = vcmask 23552
        %v252 = vsel %vm250, %v246, 0
        %vm254 = vcmask 1042432
        %v255 = vsel %vm254, %v247, 0
        %v257 = vsel %vm254, %v249, 0
        %259 = vmatprep.subr.mxu0 %v257
        %260 = vmatpush1.msra.mxu0 %v255
        %261 = vmatprep.subr.mxu0 0.0
        %262 = vmatpush1.msra.mxu0 0.0
        %263 = vmatprep.subr.mxu0 0.0
        %264 = vmatpush1.msra.mxu0 0.0
        %265 = vmatprep.subr.mxu0 0.0
        %266 = vmatpush1.msra.mxu0 0.0
        %267 = vmatprep.subr.mxu0 0.0
        %268 = vmatpush1.msra.mxu0 0.0
        %269 = vmatprep.subr.mxu0 0.0
        %270 = vmatpush1.msra.mxu0 0.0
        %271 = vmatprep.subr.mxu0 0.0
        %272 = vmatpush1.msra.mxu0 0.0
        %273 = vmatprep.subr.mxu0 0.0
        %274 = vmatpush1.msra.mxu0 0.0
        %275 = vmatprep.subr.mxu0 0.0
        %276 = vmatpush1.msra.mxu0 0.0
        %277 = vmatprep.subr.mxu0 0.0
        %278 = vmatpush1.msra.mxu0 0.0
        %279 = vmatprep.subr.mxu0 0.0
        %280 = vmatpush1.msra.mxu0 0.0
        %281 = vmatprep.subr.mxu0 0.0
        %282 = vmatpush1.msra.mxu0 0.0
        %283 = vmatprep.subr.mxu0 0.0
        %284 = vmatpush1.msra.mxu0 0.0
        %285 = vmatprep.subr.mxu0 0.0
        %286 = vmatpush1.msra.mxu0 0.0
        %287 = vmatprep.subr.mxu0 0.0
        %288 = vmatpush1.msra.mxu0 0.0
        %289 = vmatprep.subr.mxu0 0.0
        %290 = vmatpush1.msra.mxu0 0.0
        %291 = vmatprep.subr.mxu0 0.0
        %292 = vmatpush1.msra.mxu0 0.0
        %293 = vmatprep.subr.mxu0 0.0
        %294 = vmatpush1.msra.mxu0 0.0
        %295 = vmatprep.subr.mxu0 0.0
        %296 = vmatpush1.msra.mxu0 0.0
        %297 = vmatprep.subr.mxu0 0.0
        %298 = vmatpush1.msra.mxu0 0.0
        %299 = vmatprep.subr.mxu0 0.0
        %300 = vmatpush1.msra.mxu0 0.0
        %301 = vmatprep.subr.mxu0 0.0
        %302 = vmatpush1.msra.mxu0 0.0
        %303 = vmatprep.subr.mxu0 0.0
        %304 = vmatpush1.msra.mxu0 0.0
        %305 = vmatprep.subr.mxu0 0.0
        %306 = vmatpush1.msra.mxu0 0.0
        %307 = vmatprep.subr.mxu0 0.0
        %308 = vmatpush1.msra.mxu0 0.0
        %309 = vmatprep.subr.mxu0 0.0
        %310 = vmatpush1.msra.mxu0 0.0
        %311 = vmatprep.subr.mxu0 0.0
        %312 = vmatpush1.msra.mxu0 0.0
        %313 = vmatprep.subr.mxu0 0.0
        %314 = vmatpush1.msra.mxu0 0.0
        %315 = vmatprep.subr.mxu0 0.0
        %316 = vmatpush1.msra.mxu0 0.0
        %317 = vmatprep.subr.mxu0 0.0
        %318 = vmatpush1.msra.mxu0 0.0
        %319 = vmatprep.subr.mxu0 0.0
        %320 = vmatpush1.msra.mxu0 0.0
        %321 = vmatprep.subr.mxu0 0.0
        %322 = vmatpush1.msra.mxu0 0.0
        %323 = vmatprep.mubr.f32.mxu0 0.0
        %324 = vmatmul.mubr.f32.gmra.mrb[0].mxu0 %v252
        %v325 = vpop.f32.mrb[0].mxu0
        %v326 = vadd.f32 0.0, %v325
        %v327 = vpop.f32.mrb[0].mxu0
        %v328 = vadd.f32 0.0, %v327
        %329 = vdwg.mxu0
        %v330 = vld [vmem:[%s3] sm:$0x3]
        %v332 = vlaneseq
        %v333 = vshrl.u32 %v332, 7
        %v334 = vsub.s32 0, %v333
        %v335 = vrot.slane %v330, %v334
        %v336 = vlaneseq
        %v337 = vshrl.u32 %v336, 7
        %v338 = vsub.s32 1, %v337
        %v339 = vrot.slane %v330, %v338
        %v342 = vadd.f32 %v235, %v335
        %v343 = vadd.f32 %v236, %v339
        %v344 = vadd.f32 %v342, %v326
        %v345 = vadd.f32 %v343, %v328
        %v346 = vmax.f32 %v344, %v345
        %347 = vmax.xlane.f32.xlu0 %v346
        %v348 = vpop.xlane.xlu0 %347
        %v349 = vsub.f32 %v344, %v348
        %v350 = vsub.f32 %v345, %v348
        %v351 = vmul.f32 %v349, 1.442695
        %v352 = vpow.pop %v351
        %v353 = vmul.f32 %v350, 1.442695
        %v354 = vpow.pop %v353
        %v355 = vadd.f32 %v352, %v354
        %356 = vadd.xlane.f32.xlu0 %v355
        %v357 = vpop.xlane.xlu0 %356
        %v358 = vlog2.pop %v357
        %v359 = vmul.f32 %v358, 0.6931472
        %v360 = vadd.f32 %v348, %v359
        %v361 = vsub.f32 %v245, %v360
        %v362 = vlaneseq
        %v363 = vshrl.u32 %v362, 7
        %s364 = smul.u32 %s21, 8
        %v365 = vstv %s364
        %v366 = vadd.s32 %v363, %v365
        %vm367 = vcmp.lt.s32.totalorder %v366, 16
        %v368 = vsel %vm367, %v361, 0.0
        %vm369 = vcmask 7168
        %v370 = vsel %vm369, %v368, 0.0
        %371 = vadd.xlane.f32.xlu0 %v370
        %v372 = vpop.xlane.xlu0 %371
        %v373 = vrot.slane %v372, 4
        %v374 = vadd.f32 %v372, %v373
        %v375 = vrot.slane %v374, 2
        %v376 = vadd.f32 %v374, %v375
        %v377 = vrot.slane %v376, 1
        %v378 = vadd.f32 %v376, %v377
        %s379 = vtos %v378
        %v380 = vstv %s379
        %381 = vst [vmem:[%s225] sm:$0x1] %v380
        %s382 = sand.u32 %s123, 1
        %s383 = scalar_lea.sflag [#allocation4], %s382
        %s384 = sand.u32 %s123, 1
        %s385 = scalar_lea.vmem [#allocation5], %s384
        // Predicated region
        $region41: #{tpu_custom_call.1} parent=35 // pred_check
          %p386 = pneg %p133
        $region42: #{tpu_custom_call.1} parent=35 // pred_check_branch
          %388 = sbr.rel (%p386) target = $region44
        $region43: #{tpu_custom_call.1} parent=35 // pred_region
          %s390 = ssub.s32 16, 16
          %391 = vsyncadd %s383, %s390
          %s392 = smul.addr %s21, 16
          %s393 = scalar_lea.hbm %s4, %s392
          %s395 = sshll.u32 %s385, 4
          %s396 = int_to_ptr.vmem [resolvable:$true] %s395
          %398 = dma.vmem_to_hbm [thread:$0]  %s396, 16, %s393, %s383
        $region44: #{tpu_custom_call.1} parent=35 // pred_fallthru
          _
      $region36: #{tpu_custom_call.1} parent=5 // pred_fallthru
        _
      %p399 = scmp.le.s32.totalorder 2, %s16
      // Predicated region
      $region45: #{tpu_custom_call.1} parent=5 // pred_check
        %p400 = pneg %p399
      $region46: #{tpu_custom_call.1} parent=5 // pred_check_branch
        %402 = sbr.rel (%p400) target = $region48
      $region47: #{tpu_custom_call.1} parent=5 // pred_region
        %s403 = ssub.s32 %s16, 2
        // Predicated region
        $region49: #{tpu_custom_call.1} parent=47 // pred_check
          %p404 = pneg %p139
        $region50: #{tpu_custom_call.1} parent=47 // pred_check_branch
          %406 = sbr.rel (%p404) target = $region52
        $region51: #{tpu_custom_call.1} parent=47 // pred_region
          %s407 = sand.u32 %s124, 1
          %s408 = scalar_lea.sflag [#allocation4], %s407
          %s409 = sand.u32 %s124, 1
          %s410 = scalar_lea.vmem [#allocation5], %s409
          %411 = dma.done %s408, 16
        $region52: #{tpu_custom_call.1} parent=47 // pred_fallthru
          _
      $region48: #{tpu_custom_call.1} parent=5 // pred_fallthru
        _
    $region6: #{tpu_custom_call.1} parent=1 // loop_footer
      %s20 = sadd.s32 1, %s16
    $region7: #{tpu_custom_call.1} parent=1 // loop_footer_branch
      %15 = sbr.rel target = $region3
    $region8: #{tpu_custom_call.1} parent=1 // loop_exit
      _
    %412 = vsyncpa [#allocation3], 1
    %s413 = scalar_lea.sflag [#allocation3], 1
    %414 = vsyncpa %s413, 1
    %415 = vsyncpa [#allocation4], 1
    %s416 = scalar_lea.sflag [#allocation4], 1
    %417 = vsyncpa %s416, 1

</llo_original>
